<compile_context>
chip_gen: v7x
topology: tpu7x:2x2x1
jax: 0.10.0
libtpu: 0.0.40
codegen_flags: <defaults>
</compile_context>

<pallas_src>
import jax
import jax.numpy as jnp
from jax.experimental import pallas as pl
from jax.experimental.pallas import tpu as pltpu

EPS = 1e-10


def _l2norm_kernel(x_ref, w_ref, o_ref):
    # x_ref: (1, C, TW) tile  (C on sublanes, spatial on lanes)
    # w_ref: (1, C, 1) per-channel scale (resident in VMEM, constant index_map)
    x = x_ref[...].astype(jnp.float32)
    sq_sum = jnp.sum(x * x, axis=1, keepdims=True)          # (1, 1, TW)
    norm = jnp.sqrt(sq_sum) + EPS                            # eps AFTER sqrt (torch)
    inv = pl.reciprocal(norm, approx=True)                   # EUP reciprocal
    out = x * inv * w_ref[...].astype(jnp.float32)           # broadcast (1, C, 1)
    o_ref[...] = out.astype(o_ref.dtype)


def _choose_spatial_tile(S, C, itemsize):
    # Target ~8 MiB per x tile; with in+out double-buffering that's ~32 MiB,
    # within the raised scoped limit and well under v7x's 64 MiB physical VMEM.
    budget = 8 << 20
    tw = min(S, max(1, budget // max(1, C * itemsize)))
    if tw >= S:
        return S                     # full-extent lane dim: always legal
    return max(128, (tw // 128) * 128)  # multiple of 128 lanes; tail block masked


@jax.jit
def l2norm(x_nchw, weight):
    """x_nchw: (N, C, H, W); weight: (C,).  Returns (N, C, H, W)."""
    N, C, H, W = x_nchw.shape
    S = H * W
    x3d = x_nchw.reshape(N, C, S)            # free reshape, no transpose
    w3d = weight.reshape(1, C, 1)

    tw = _choose_spatial_tile(S, C, x_nchw.dtype.itemsize)
    grid = (N, pl.cdiv(S, tw))

    out3d = pl.pallas_call(
        _l2norm_kernel,
        out_shape=jax.ShapeDtypeStruct((N, C, S), x_nchw.dtype),
        grid_spec=pltpu.PrefetchScalarGridSpec(
            num_scalar_prefetch=0,
            grid=grid,
            in_specs=[
                pl.BlockSpec((1, C, tw), lambda n, j: (n, 0, j)),
                pl.BlockSpec((1, C, 1), lambda n, j: (0, 0, 0)),
            ],
            out_specs=pl.BlockSpec((1, C, tw), lambda n, j: (n, 0, j)),
        ),
        compiler_params=pltpu.CompilerParams(
            dimension_semantics=("parallel", "parallel"),
            vmem_limit_bytes=64 << 20,
        ),
    )(x3d, w3d)

    return out3d.reshape(N, C, H, W)


def l2norm_reference(x_nchw, weight):
    norm = jnp.sqrt(jnp.sum(x_nchw.astype(jnp.float32) ** 2, axis=1, keepdims=True)) + EPS
    return (x_nchw / norm * weight.reshape(1, -1, 1, 1)).astype(x_nchw.dtype)


if __name__ == "__main__":
    key = jax.random.PRNGKey(0)
    N, C, H, W = 2, 4, 16, 16
    x = jax.random.normal(key, (N, C, H, W), dtype=jnp.float32)

    # Deterministic parameter init, matching L2Norm.__init__:
    # weight = scale * ones(n_channels)   (scale = 10.0, typical for SFD)
    scale = 10.0
    weight = jnp.full((C,), scale, dtype=jnp.float32)

    out = jax.block_until_ready(l2norm(x, weight))
    ref = l2norm_reference(x, weight)

    assert out.shape == (N, C, H, W)
    # Tolerance accounts for the approximate EUP reciprocal (outputs scaled by 10).
    max_err = float(jnp.max(jnp.abs(out - ref)))
    assert jnp.allclose(out, ref, atol=1e-2, rtol=1e-2), max_err

    print("KERNEL_OK")
</pallas_src>

<mosaic_0001>
module attributes {stable_mosaic.version = 11 : i64} {
  func.func @_l2norm_kernel(%arg0: i32, %arg1: i32, %arg2: memref<1x4x256xf32, #tpu.memory_space<vmem>>, %arg3: memref<1x4x1xf32, #tpu.memory_space<vmem>>, %arg4: memref<1x4x256xf32, #tpu.memory_space<vmem>>) attributes {dimension_semantics = [#tpu.dimension_semantics<parallel>, #tpu.dimension_semantics<parallel>], iteration_bounds = array<i64: 2, 1>, scalar_prefetch = 0 : i64, scratch_operands = 0 : i64, tpu.core_type = #tpu.core_type<tc>, window_params = [{transform_indices = @transform_0, window_bounds = array<i64: 1, 4, 256>}, {pipeline_mode = #tpu.pipeline_mode<synchronous>, transform_indices = @transform_1, window_bounds = array<i64: 1, 4, 1>}, {transform_indices = @transform_2, window_bounds = array<i64: 1, 4, 256>}]} {
    %c0 = arith.constant 0 : index
    %c0_0 = arith.constant 0 : index
    %c0_1 = arith.constant 0 : index
    %0 = vector.load %arg2[%c0, %c0_0, %c0_1] : memref<1x4x256xf32, #tpu.memory_space<vmem>>, vector<1x4x256xf32>
    %1 = arith.mulf %0, %0 : vector<1x4x256xf32>
    %cst = arith.constant dense<0.000000e+00> : vector<1x256xf32>
    %2 = vector.multi_reduction <add>, %1, %cst [1] : vector<1x4x256xf32> to vector<1x256xf32>
    %3 = vector.shape_cast %2 : vector<1x256xf32> to vector<1x1x256xf32>
    %4 = math.sqrt %3 : vector<1x1x256xf32>
    %cst_2 = arith.constant 1.000000e-10 : f32
    %5 = vector.broadcast %cst_2 : f32 to vector<1x1x256xf32>
    %6 = arith.addf %4, %5 : vector<1x1x256xf32>
    %7 = tpu.reciprocal %6 {approx = true} : vector<1x1x256xf32> -> vector<1x1x256xf32>
    %8 = vector.broadcast %7 : vector<1x1x256xf32> to vector<1x4x256xf32>
    %9 = arith.mulf %0, %8 : vector<1x4x256xf32>
    %c0_3 = arith.constant 0 : index
    %c0_4 = arith.constant 0 : index
    %c0_5 = arith.constant 0 : index
    %10 = vector.load %arg3[%c0_3, %c0_4, %c0_5] : memref<1x4x1xf32, #tpu.memory_space<vmem>>, vector<1x4x1xf32>
    %11 = vector.broadcast %10 : vector<1x4x1xf32> to vector<1x4x256xf32>
    %12 = arith.mulf %9, %11 : vector<1x4x256xf32>
    %c0_6 = arith.constant 0 : index
    %c0_7 = arith.constant 0 : index
    %c0_8 = arith.constant 0 : index
    %13 = vector.load %arg4[%c0_6, %c0_7, %c0_8] : memref<1x4x256xf32, #tpu.memory_space<vmem>>, vector<1x4x256xf32>
    tpu.vector_store %arg4[%c0_6, %c0_7, %c0_8], %12 {strides = array<i32>} : memref<1x4x256xf32, #tpu.memory_space<vmem>>, vector<1x4x256xf32>,
    return
  }
  func.func @transform_0(%arg0: i32, %arg1: i32) -> (i32, i32, i32) {
    %c0_i32 = arith.constant 0 : i32
    %c0_i32_0 = arith.constant 0 : i32
    return %arg0, %c0_i32, %arg1 : i32, i32, i32
  }
  func.func @transform_1(%arg0: i32, %arg1: i32) -> (i32, i32, i32) {
    %c0_i32 = arith.constant 0 : i32
    %c0_i32_0 = arith.constant 0 : i32
    %c0_i32_1 = arith.constant 0 : i32
    %c0_i32_2 = arith.constant 0 : i32
    return %c0_i32, %c0_i32_0, %c0_i32_1 : i32, i32, i32
  }
  func.func @transform_2(%arg0: i32, %arg1: i32) -> (i32, i32, i32) {
    %c0_i32 = arith.constant 0 : i32
    %c0_i32_0 = arith.constant 0 : i32
    return %arg0, %c0_i32, %arg1 : i32, i32, i32
  }
}

</mosaic_0001>

<llo_original>
// kernel: l2norm.1
$region0: #{l2norm.1}
  #allocation0 [shape = 'u32[]', space=smem, size = 0x4, offset = 0x4, fixed_abs, tag = 'smem constant byte address 0x4 - core index']
  #allocation1 [shape = 'u32[144,128]{1,0:T(1,128)}', space=vmem, size = 0x12000, scoped, tag = 'internal scratch']
  %s0 = inlined_call_operand.hbm [shape: f32[2,4,256], index: 0, kind: input, shape index: {}]
  %s1 = inlined_call_operand.hbm [shape: f32[1,4,1], index: 1, kind: input, shape index: {}]
  %s2 = inlined_call_operand.hbm [shape: f32[2,4,256], index: 2, kind: output, shape index: {}]
  %s3 = sld [smem:[#allocation0]]
  $region49: #{l2norm.1} parent=0
    _
  %s5 = ssub.s32 1, %s3
  %s6 = scalar_select 0, %s5, %s3
  $region1: #{l2norm.1} parent=0
    #allocation2 [shape = 'u8[8192]{0}', space=vmem, size = 0x2000, scoped, tag = 'input window, operand 0']
    #allocation3 [shape = 's32[2]{0}', space=sflag, size = 0x8, scoped, tag = 'scoped memory for l2norm.1']
    #allocation4 [shape = 's32[2]{0}', space=sflag, size = 0x8, scoped, tag = 'scoped memory for l2norm.1']
    #allocation5 [shape = 'u8[2048]{0}', space=vmem, size = 0x800, scoped, tag = 'input window, operand 1, single buffered']
    #allocation6 [shape = 's32[1]{0}', space=sflag, size = 0x4, scoped, tag = 'scoped memory for l2norm.1']
    #allocation7 [shape = 'u8[8192]{0}', space=vmem, size = 0x2000, scoped, tag = 'output window, operand 0']
    %7 = vsyncpa [#allocation3], 0
    %s8 = scalar_lea.sflag [#allocation3], 1
    %9 = vsyncpa %s8, 0
    %10 = vsyncpa [#allocation6], 0
    %11 = vsyncpa [#allocation4], 0
    %s12 = scalar_lea.sflag [#allocation4], 1
    %13 = vsyncpa %s12, 0
    loop: start=0, step=1, limit=4
    $region2: #{l2norm.1} parent=1 // loop_pre_header
      _
    $region3: #{l2norm.1} parent=1 // loop_header
      %s15 = sphi 0, %s19
      %p16 = scmp.ge.s32.totalorder %s15, 4
      %s22 = sphi 0, %s34
      %s23 = sphi 0, %s30
      %s24 = sphi 0, %s22
      %s25 = sphi 0, %s23
      %s26 = sphi 0, %s24
      %s27 = sphi 0, %s25
      %s39 = sphi 0, %s41
      %s42 = sphi 0, %s39
      %s43 = sphi 0, %s42
      %s59 = sphi 0, %s43
      %s63 = sphi 0, %s63
      %s65 = sphi 0, %s63
      %s66 = sphi 0, %s65
      %s80 = sphi 0, %s66
      %s88 = sphi 0, %s90
      %s91 = sphi 0, %s88
      %s92 = sphi 0, %s91
      %s108 = sphi 0, %s92
    $region4: #{l2norm.1} parent=1 // loop_header_branch
      %18 = sbr.rel (%p16) target = $region8
    $region5: #{l2norm.1} parent=1 // loop_body
      %s20 = ssub.s32 %s15, 1
      %s21 = ssub.s32 %s15, 2
      %s28 = sadd.s32 1, %s23
      %p29 = scmp.ge.s32.totalorder %s28, 1
      %s30 = scalar_select %p29, 0, %s28
      %s31 = sadd.s32 1, %s22
      %s32 = scalar_select %p29, %s31, %s22
      %p33 = scmp.ge.s32.totalorder %s32, 2
      %s34 = scalar_select %p33, 0, %s32
      %s35 = ssub.s32 %s22, %s34
      %s36 = ssub.s32 %s23, %s30
      %s37 = sor.u32 %s35, %s36
      %p38 = scmp.eq.s32.totalorder %s37, 0
      %s40 = sadd.s32 %s39, 1
      %s41 = scalar_select %p38, %s39, %s40
      %p44 = pneg %p38
      %p45 = scmp.eq.s32.totalorder %s15, 1
      %p46 = por %p44, %p45
      %p47 = scmp.ne.s32.totalorder %s39, %s42
      %p48 = scmp.eq.s32.totalorder %s15, 0
      %p49 = por %p47, %p48
      %p50 = scmp.ne.s32.totalorder %s39, %s42
      %p51 = scmp.eq.s32.totalorder %s20, 1
      %p52 = por %p50, %p51
      %p53 = scmp.ne.s32.totalorder %s42, %s43
      %p54 = scmp.eq.s32.totalorder %s20, 0
      %p55 = por %p53, %p54
      %p56 = scmp.ne.s32.totalorder %s42, %s43
      %p57 = scmp.eq.s32.totalorder %s21, 1
      %p58 = por %p56, %p57
      %p60 = scmp.ne.s32.totalorder %s43, %s59
      %p61 = scmp.eq.s32.totalorder %s21, 0
      %p62 = por %p60, %p61
      %s64 = sadd.s32 %s63, 1
      %p67 = scmp.eq.s32.totalorder %s15, 1
      %p68 = scmp.ne.s32.totalorder %s63, %s65
      %p69 = scmp.eq.s32.totalorder %s15, 0
      %p70 = por %p68, %p69
      %p71 = scmp.ne.s32.totalorder %s63, %s65
      %p72 = scmp.eq.s32.totalorder %s20, 1
      %p73 = por %p71, %p72
      %p74 = scmp.ne.s32.totalorder %s65, %s66
      %p75 = scmp.eq.s32.totalorder %s20, 0
      %p76 = por %p74, %p75
      %p77 = scmp.ne.s32.totalorder %s65, %s66
      %p78 = scmp.eq.s32.totalorder %s21, 1
      %p79 = por %p77, %p78
      %p81 = scmp.ne.s32.totalorder %s66, %s80
      %p82 = scmp.eq.s32.totalorder %s21, 0
      %p83 = por %p81, %p82
      %s84 = ssub.s32 %s22, %s34
      %s85 = ssub.s32 %s23, %s30
      %s86 = sor.u32 %s84, %s85
      %p87 = scmp.eq.s32.totalorder %s86, 0
      %s89 = sadd.s32 %s88, 1
      %s90 = scalar_select %p87, %s88, %s89
      %p93 = pneg %p87
      %p94 = scmp.eq.s32.totalorder %s15, 1
      %p95 = por %p93, %p94
      %p96 = scmp.ne.s32.totalorder %s88, %s91
      %p97 = scmp.eq.s32.totalorder %s15, 0
      %p98 = por %p96, %p97
      %p99 = scmp.ne.s32.totalorder %s88, %s91
      %p100 = scmp.eq.s32.totalorder %s20, 1
      %p101 = por %p99, %p100
      %p102 = scmp.ne.s32.totalorder %s91, %s92
      %p103 = scmp.eq.s32.totalorder %s20, 0
      %p104 = por %p102, %p103
      %p105 = scmp.ne.s32.totalorder %s91, %s92
      %p106 = scmp.eq.s32.totalorder %s21, 1
      %p107 = por %p105, %p106
      %p109 = scmp.ne.s32.totalorder %s92, %s108
      %p110 = scmp.eq.s32.totalorder %s21, 0
      %p111 = por %p109, %p110
      %p112 = scmp.le.s32.totalorder 1, %s15
      %p113 = scmp.lt.s32.totalorder %s15, 3
      %p114 = pnand %p112, %p113
      %p115 = pneg %p114
      // Predicated region
      $region9: #{l2norm.1} parent=5 // pred_check
        _
      $region10: #{l2norm.1} parent=5 // pred_check_branch
        %117 = sbr.rel (%p114) target = $region12
      $region11: #{l2norm.1} parent=5 // pred_region
        %s118 = ssub.s32 %s15, 1
        // Predicated region
        $region13: #{l2norm.1} parent=11 // pred_check
          %p119 = pneg %p76
        $region14: #{l2norm.1} parent=11 // pred_check_branch
          %121 = sbr.rel (%p119) target = $region16
        $region15: #{l2norm.1} parent=11 // pred_region
          %s123 = ssub.s32 64, 64
          %124 = vsyncadd [#allocation6], %s123
          %s126 = sshll.u32 [#allocation5], 4
          %s127 = int_to_ptr.vmem [resolvable:$true] %s126
          %129 = dma.hbm_to_vmem [thread:$0]  %s1, 64, %s127, [#allocation6]
        $region16: #{l2norm.1} parent=11 // pred_fallthru
          _
      $region12: #{l2norm.1} parent=5 // pred_fallthru
        _
      %p130 = scmp.lt.s32.totalorder %s15, 2
      // Predicated region
      $region17: #{l2norm.1} parent=5 // pred_check
        %p131 = pneg %p130
      $region18: #{l2norm.1} parent=5 // pred_check_branch
        %133 = sbr.rel (%p131) target = $region20
      $region19: #{l2norm.1} parent=5 // pred_region
        // Predicated region
        $region21: #{l2norm.1} parent=19 // pred_check
          %p134 = pneg %p49
        $region22: #{l2norm.1} parent=19 // pred_check_branch
          %136 = sbr.rel (%p134) target = $region24
        $region23: #{l2norm.1} parent=19 // pred_region
          %s137 = sand.u32 %s39, 1
          %s138 = scalar_lea.sflag [#allocation3], %s137
          %s139 = sand.u32 %s39, 1
          %s140 = smul.addr %s139, 8
          %s141 = scalar_lea.vmem [#allocation2], %s140
          %s142 = smul.u32 2, %s23
          %s144 = ssub.s32 128, 128
          %145 = vsyncadd %s138, %s144
          %s146 = smul.addr %s22, 2
          %s147 = sadd.s32 %s142, %s146
          %s148 = smul.addr %s147, 64
          %s149 = scalar_lea.hbm %s0, %s148
          %s151 = sshll.u32 %s141, 4
          %s152 = int_to_ptr.vmem [resolvable:$true] %s151
          %154 = dma.hbm_to_vmem [thread:$0]  %s149, 128, %s152, %s138
        $region24: #{l2norm.1} parent=19 // pred_fallthru
          _
      $region20: #{l2norm.1} parent=5 // pred_fallthru
        _
      %p155 = scmp.le.s32.totalorder 1, %s15
      %p156 = scmp.lt.s32.totalorder %s15, 3
      %p157 = pnand %p155, %p156
      %p158 = pneg %p157
      // Predicated region
      $region25: #{l2norm.1} parent=5 // pred_check
        _
      $region26: #{l2norm.1} parent=5 // pred_check_branch
        %160 = sbr.rel (%p157) target = $region28
      $region27: #{l2norm.1} parent=5 // pred_region
        %s161 = ssub.s32 %s15, 1
        %s162 = sand.u32 %s42, 1
        %s163 = scalar_lea.sflag [#allocation3], %s162
        %s164 = sand.u32 %s42, 1
        %s165 = smul.addr %s164, 8
        %s166 = scalar_lea.vmem [#allocation2], %s165
        // Predicated region
        $region29: #{l2norm.1} parent=27 // pred_check
          %p167 = pneg %p55
        $region30: #{l2norm.1} parent=27 // pred_check_branch
          %169 = sbr.rel (%p167) target = $region32
        $region31: #{l2norm.1} parent=27 // pred_region
          %170 = dma.done %s163, 128
        $region32: #{l2norm.1} parent=27 // pred_fallthru
          _
        // Predicated region
        $region33: #{l2norm.1} parent=27 // pred_check
          %p171 = pneg %p76
        $region34: #{l2norm.1} parent=27 // pred_check_branch
          %173 = sbr.rel (%p171) target = $region36
        $region35: #{l2norm.1} parent=27 // pred_region
          %174 = dma.done [#allocation6], 64
        $region36: #{l2norm.1} parent=27 // pred_fallthru
          _
        %s175 = sand.u32 %s42, 1
        %s176 = scalar_lea.sflag [#allocation3], %s175
        %s177 = sand.u32 %s42, 1
        %s178 = smul.addr %s177, 8
        %s179 = scalar_lea.vmem [#allocation2], %s178
        %p180 = pneg %p55
        %p181 = pneg %p52
        %p182 = pneg %p76
        %p183 = pneg %p73
        %p184 = pneg %p104
        %p185 = pneg %p101
        %s186 = sand.u32 %s91, 1
        %s187 = scalar_lea.sflag [#allocation4], %s186
        %s188 = sand.u32 %s91, 1
        %s189 = smul.addr %s188, 8
        %s190 = scalar_lea.vmem [#allocation7], %s189
        %s191 = smul.u32 2, %s25
        %s192 = smul.u32 2, %s25
        %v193 = vld [vmem:[%s166] sm:$0xff]
        %v194 = vmul.f32 %v193, %v193
        %v196 = vcombine.high %v194, %v194
        %vm198 = vcmask 1043456
        %v199 = vsel %vm198, %v194, 0.0
        %v200 = vrot.slane %v199, 4
        %v201 = vadd.f32 %v199, %v200
        %v202 = vrot.slane %v201, 2
        %v203 = vadd.f32 %v201, %v202
        %v204 = vrot.slane %v203, 1
        %v205 = vadd.f32 %v203, %v204
        %v206 = vsel %vm198, %v196, 0.0
        %v207 = vrot.slane %v206, 4
        %v208 = vadd.f32 %v206, %v207
        %v209 = vrot.slane %v208, 2
        %v210 = vadd.f32 %v208, %v209
        %v211 = vrot.slane %v210, 1
        %v212 = vadd.f32 %v210, %v211
        %v213 = vrsqrt.pop %v205
        %v214 = vmul.f32 %v205, %v213
        %vm215 = vcmp.eq.f32.partialorder %v205, inf
        %v216 = vsel %vm215, %v205, %v214
        %vm217 = vcmp.eq.f32.partialorder %v205, 0.0
        %v218 = vand.u32 %v205, 2147483648
        %v219 = vsel %vm217, %v218, %v216
        %v220 = vrsqrt.pop %v212
        %v221 = vmul.f32 %v212, %v220
        %vm222 = vcmp.eq.f32.partialorder %v212, inf
        %v223 = vsel %vm222, %v212, %v221
        %vm224 = vcmp.eq.f32.partialorder %v212, 0.0
        %v225 = vand.u32 %v212, 2147483648
        %v226 = vsel %vm224, %v225, %v223
        %v227 = vadd.f32 %v219, 1e-10
        %v228 = vadd.f32 %v226, 1e-10
        %v229 = vrcp.pop %v227
        %v230 = vrcp.pop %v228
        %v233 = vcombine.low %v229, %v230
        %v235 = vmul.f32 %v193, %v233
        %v236 = vld [vmem:[#allocation5] sm:$0xf]
        %238 = vset.pattern.permute.xlu0 0
        %239 = vperm.xlu0 %238, %v236
        %v240 = vpop.permute.xlu0 %239
        %v242 = vunpack.c.l.s4 839922192
        %v243 = vunpack.c.0.s8 %v242
        %v244 = vlaneseq
        %v245 = vshrl.u32 %v244, 7
        %v246 = vsub.s32 %v243, %v245
        %v247 = vrot.slane %v240, %v246
        %v249 = vmul.f32 %v235, %v247
        %250 = vst [vmem:[%s190] sm:$0xff] %v249
        %s251 = sand.u32 %s91, 1
        %s252 = scalar_lea.sflag [#allocation4], %s251
        %s253 = sand.u32 %s91, 1
        %s254 = smul.addr %s253, 8
        %s255 = scalar_lea.vmem [#allocation7], %s254
        // Predicated region
        $region37: #{l2norm.1} parent=27 // pred_check
          %p256 = pneg %p101
        $region38: #{l2norm.1} parent=27 // pred_check_branch
          %258 = sbr.rel (%p256) target = $region40
        $region39: #{l2norm.1} parent=27 // pred_region
          %s259 = smul.u32 2, %s25
          %s261 = ssub.s32 128, 128
          %262 = vsyncadd %s252, %s261
          %s263 = smul.addr %s24, 2
          %s264 = sadd.s32 %s259, %s263
          %s265 = smul.addr %s264, 64
          %s266 = scalar_lea.hbm %s2, %s265
          %s268 = sshll.u32 %s255, 4
          %s269 = int_to_ptr.vmem [resolvable:$true] %s268
          %271 = dma.vmem_to_hbm [thread:$0]  %s269, 128, %s266, %s252
        $region40: #{l2norm.1} parent=27 // pred_fallthru
          _
      $region28: #{l2norm.1} parent=5 // pred_fallthru
        _
      %p272 = scmp.le.s32.totalorder 2, %s15
      // Predicated region
      $region41: #{l2norm.1} parent=5 // pred_check
        %p273 = pneg %p272
      $region42: #{l2norm.1} parent=5 // pred_check_branch
        %275 = sbr.rel (%p273) target = $region44
      $region43: #{l2norm.1} parent=5 // pred_region
        %s276 = ssub.s32 %s15, 2
        // Predicated region
        $region45: #{l2norm.1} parent=43 // pred_check
          %p277 = pneg %p107
        $region46: #{l2norm.1} parent=43 // pred_check_branch
          %279 = sbr.rel (%p277) target = $region48
        $region47: #{l2norm.1} parent=43 // pred_region
          %s280 = sand.u32 %s92, 1
          %s281 = scalar_lea.sflag [#allocation4], %s280
          %s282 = sand.u32 %s92, 1
          %s283 = smul.addr %s282, 8
          %s284 = scalar_lea.vmem [#allocation7], %s283
          %285 = dma.done %s281, 128
        $region48: #{l2norm.1} parent=43 // pred_fallthru
          _
      $region44: #{l2norm.1} parent=5 // pred_fallthru
        _
    $region6: #{l2norm.1} parent=1 // loop_footer
      %s19 = sadd.s32 1, %s15
    $region7: #{l2norm.1} parent=1 // loop_footer_branch
      %14 = sbr.rel target = $region3
    $region8: #{l2norm.1} parent=1 // loop_exit
      _
    %286 = vsyncpa [#allocation3], 1
    %s287 = scalar_lea.sflag [#allocation3], 1
    %288 = vsyncpa %s287, 1
    %289 = vsyncpa [#allocation6], 1
    %290 = vsyncpa [#allocation4], 1
    %s291 = scalar_lea.sflag [#allocation4], 1
    %292 = vsyncpa %s291, 1

</llo_original>
